<compile_context>
chip_gen: v7x
topology: tpu7x:2x2x1
jax: 0.10.0
libtpu: 0.0.40
codegen_flags: <defaults>
</compile_context>

<pallas_src>
import jax
import jax.numpy as jnp
from jax.experimental import pallas as pl
from jax.experimental.pallas import tpu as pltpu


def _round_up(x, m):
    return (x + m - 1) // m * m


# ----------------------------------------------------------------------------
# Pallas kernel: out = x @ W + b   (f32 throughout, MXU accumulate in f32)
# ----------------------------------------------------------------------------
def linear_rs_kernel(x_ref, w_ref, b_ref, o_ref):
    # x_ref: [TM, Din] (f32)   w_ref: [Din, Dout] (f32)
    # b_ref: [1, Dout] (f32)   o_ref: [TM, Dout]  (f32)
    acc = jnp.dot(x_ref[...], w_ref[...], preferred_element_type=jnp.float32)
    o_ref[...] = (acc + b_ref[...]).astype(o_ref.dtype)


def linear_rs_pallas(x, w_big, bias_row, *, tm=1024):
    """out = x @ w_big + bias_row, tiled over the node dimension only."""
    n, d_in = x.shape
    d_in_w, d_out = w_big.shape
    assert d_in == d_in_w
    assert bias_row.shape == (1, d_out)

    # Node tile: large by default so the ~0.35 us per-grid-step overhead is
    # amortized, but capped so the grid has at least 2 steps (v7x has two
    # TensorCores to shard the "parallel" axis across).  Multiple of 8 keeps
    # the sublane constraint on the block shape satisfied; the feature dims
    # are left unpadded (block dim == full array dim is always legal).
    tm_eff = max(8, min(tm, _round_up(pl.cdiv(n, 2), 8)))
    grid = (pl.cdiv(n, tm_eff),)

    # Per-step VMEM estimate (double-buffered x / out tiles + resident W,
    # bias) with 2x headroom; clamp to 48 MiB so it is safe on v7x as well.
    vmem_est = (2 * tm_eff * d_in * 4
                + 2 * tm_eff * d_out * 4
                + 2 * d_in * d_out * 4
                + 2 * d_out * 4)
    vmem_limit = int(min(48 * 1024 * 1024,
                         max(2 * vmem_est, 16 * 1024 * 1024)))

    return pl.pallas_call(
        linear_rs_kernel,
        out_shape=jax.ShapeDtypeStruct((n, d_out), x.dtype),
        grid_spec=pltpu.PrefetchScalarGridSpec(
            num_scalar_prefetch=0,
            grid=grid,
            in_specs=[
                # x: tiled over nodes, full (unpadded) feature width.
                pl.BlockSpec((tm_eff, d_in), lambda i: (i, 0)),
                # W and bias: grid-invariant, DMA'd once by the pipeline.
                pl.BlockSpec((d_in, d_out), lambda i: (0, 0)),
                pl.BlockSpec((1, d_out), lambda i: (0, 0)),
            ],
            out_specs=pl.BlockSpec((tm_eff, d_out), lambda i: (i, 0)),
        ),
        compiler_params=pltpu.CompilerParams(
            dimension_semantics=("parallel",),
            vmem_limit_bytes=vmem_limit,
        ),
    )(x, w_big, bias_row)


# ----------------------------------------------------------------------------
# Parameter construction (host-side, one-time; mirrors LinearRS.__init__)
# ----------------------------------------------------------------------------
def make_linear_rs_params(key, irreps_in, irreps_out, dtype=jnp.float32):
    """irreps_* : list of (mul, l) with even parity, matched one-to-one by l.

    Returns (W_big [Din, Dout], bias_row [1, Dout]) ready for the kernel (no
    per-call pad/cast needed).  The bias lives only on the l=0 even output
    slice and is zero-initialized, exactly as in the torch module.
    """
    assert [l for _, l in irreps_in] == [l for _, l in irreps_out]
    d_in = sum(m * (2 * l + 1) for m, l in irreps_in)
    d_out = sum(m * (2 * l + 1) for m, l in irreps_out)

    w_big = jnp.zeros((d_in, d_out), dtype=dtype)
    bias_row = jnp.zeros((1, d_out), dtype=dtype)
    off_in = 0
    off_out = 0
    keys = jax.random.split(key, len(irreps_in))
    for k, (m_in, l), (m_out, _) in zip(keys, irreps_in, irreps_out):
        d = 2 * l + 1
        # e3nn internal weights ~ N(0,1), rescaled by sqrt_k = 1/sqrt(fan_in),
        # fan_in = mul_in * 1 ('uvw' with the 1x0e second input).
        sqrt_k = 1.0 / (float(m_in) ** 0.5)
        w_l = jax.random.normal(k, (m_in, m_out), dtype=dtype) * sqrt_k
        # Expand to a block: identity over the (2l+1) m-components.
        blk = jnp.einsum("uw,ij->uiwj", w_l, jnp.eye(d, dtype=dtype))
        blk = blk.reshape(m_in * d, m_out * d)
        w_big = w_big.at[off_in:off_in + m_in * d,
                         off_out:off_out + m_out * d].set(blk)
        # Bias only on 0e outputs; torch initializes it to zeros (already 0).
        off_in += m_in * d
        off_out += m_out * d

    return w_big, bias_row


# ----------------------------------------------------------------------------
# Main
# ----------------------------------------------------------------------------
if __name__ == "__main__":
    key = jax.random.PRNGKey(0)
    k_x, k_w, k_x2, k_x3 = jax.random.split(key, 4)

    # irreps_in = irreps_out = '16x0e + 8x1e + 4x2e'  -> dim = 16 + 24 + 20 = 60
    irreps_in = [(16, 0), (8, 1), (4, 2)]
    irreps_out = [(16, 0), (8, 1), (4, 2)]
    d_in = sum(m * (2 * l + 1) for m, l in irreps_in)

    w_big, bias_row = make_linear_rs_params(k_w, irreps_in, irreps_out)

    def ref_fn(xa):
        return jnp.dot(xa, w_big, preferred_element_type=jnp.float32) + bias_row

    # Case 1: 64 nodes -> tm capped to 32, grid of 2 (exercises megacore split).
    n_nodes = 64
    x = jax.random.normal(k_x, (n_nodes, d_in), dtype=jnp.float32)
    out = jax.block_until_ready(linear_rs_pallas(x, w_big, bias_row))
    ref = ref_fn(x)
    assert out.shape == ref.shape
    # Tolerance covers TPU default-precision MXU matmul vs XLA reference.
    assert jnp.allclose(out, ref, atol=2e-2, rtol=2e-2)

    # Case 2: non-multiple node count -> partial last block (masked stores).
    n_nodes2 = 100
    x2 = jax.random.normal(k_x2, (n_nodes2, d_in), dtype=jnp.float32)
    out2 = jax.block_until_ready(linear_rs_pallas(x2, w_big, bias_row))
    ref2 = ref_fn(x2)
    assert out2.shape == ref2.shape
    assert jnp.allclose(out2, ref2, atol=2e-2, rtol=2e-2)

    # Case 3: larger node count -> exercises the multi-step pipelined path.
    n_nodes3 = 1000
    x3 = jax.random.normal(k_x3, (n_nodes3, d_in), dtype=jnp.float32)
    out3 = jax.block_until_ready(linear_rs_pallas(x3, w_big, bias_row, tm=256))
    ref3 = ref_fn(x3)
    assert out3.shape == ref3.shape
    assert jnp.allclose(out3, ref3, atol=2e-2, rtol=2e-2)

    print("KERNEL_OK")
</pallas_src>

<mosaic_0001>
module attributes {stable_mosaic.version = 11 : i64} {
  func.func @linear_rs_kernel(%arg0: i32, %arg1: memref<32x60xf32, #tpu.memory_space<vmem>>, %arg2: memref<60x60xf32, #tpu.memory_space<vmem>>, %arg3: memref<1x60xf32, #tpu.memory_space<vmem>>, %arg4: memref<32x60xf32, #tpu.memory_space<vmem>>) attributes {dimension_semantics = [#tpu.dimension_semantics<parallel>], iteration_bounds = array<i64: 2>, scalar_prefetch = 0 : i64, scratch_operands = 0 : i64, tpu.core_type = #tpu.core_type<tc>, window_params = [{transform_indices = @transform_0, window_bounds = array<i64: 32, 60>}, {pipeline_mode = #tpu.pipeline_mode<synchronous>, transform_indices = @transform_1, window_bounds = array<i64: 60, 60>}, {pipeline_mode = #tpu.pipeline_mode<synchronous>, transform_indices = @transform_2, window_bounds = array<i64: 1, 60>}, {transform_indices = @transform_3, window_bounds = array<i64: 32, 60>}]} {
    %c0 = arith.constant 0 : index
    %c0_0 = arith.constant 0 : index
    %0 = vector.load %arg1[%c0, %c0_0] : memref<32x60xf32, #tpu.memory_space<vmem>>, vector<32x60xf32>
    %c0_1 = arith.constant 0 : index
    %c0_2 = arith.constant 0 : index
    %1 = vector.load %arg2[%c0_1, %c0_2] : memref<60x60xf32, #tpu.memory_space<vmem>>, vector<60x60xf32>
    %cst = arith.constant dense<0.000000e+00> : vector<32x60xf32>
    %2 = tpu.matmul %0, %1, %cst {dimension_numbers = #tpu.dot_dimension_numbers<[1], [0], [0], [1], [0, 0, 1, 1], [], []>} : vector<32x60xf32>, vector<60x60xf32>, vector<32x60xf32> -> vector<32x60xf32>
    %c0_3 = arith.constant 0 : index
    %c0_4 = arith.constant 0 : index
    %3 = vector.load %arg3[%c0_3, %c0_4] : memref<1x60xf32, #tpu.memory_space<vmem>>, vector<1x60xf32>
    %4 = vector.broadcast %3 : vector<1x60xf32> to vector<32x60xf32>
    %5 = arith.addf %2, %4 : vector<32x60xf32>
    %c0_5 = arith.constant 0 : index
    %c0_6 = arith.constant 0 : index
    %6 = vector.load %arg4[%c0_5, %c0_6] : memref<32x60xf32, #tpu.memory_space<vmem>>, vector<32x60xf32>
    tpu.vector_store %arg4[%c0_5, %c0_6], %5 {strides = array<i32>} : memref<32x60xf32, #tpu.memory_space<vmem>>, vector<32x60xf32>,
    return
  }
  func.func @transform_0(%arg0: i32) -> (i32, i32) {
    %c0_i32 = arith.constant 0 : i32
    %c0_i32_0 = arith.constant 0 : i32
    return %arg0, %c0_i32 : i32, i32
  }
  func.func @transform_1(%arg0: i32) -> (i32, i32) {
    %c0_i32 = arith.constant 0 : i32
    %c0_i32_0 = arith.constant 0 : i32
    %c0_i32_1 = arith.constant 0 : i32
    return %c0_i32, %c0_i32_0 : i32, i32
  }
  func.func @transform_2(%arg0: i32) -> (i32, i32) {
    %c0_i32 = arith.constant 0 : i32
    %c0_i32_0 = arith.constant 0 : i32
    %c0_i32_1 = arith.constant 0 : i32
    return %c0_i32, %c0_i32_0 : i32, i32
  }
  func.func @transform_3(%arg0: i32) -> (i32, i32) {
    %c0_i32 = arith.constant 0 : i32
    %c0_i32_0 = arith.constant 0 : i32
    return %arg0, %c0_i32 : i32, i32
  }
}

</mosaic_0001>

<llo_original>
// kernel: tpu_custom_call.1
$region0: #{tpu_custom_call.1}
  #allocation0 [shape = 'u32[]', space=smem, size = 0x4, offset = 0x4, fixed_abs, tag = 'smem constant byte address 0x4 - core index']
  #allocation1 [shape = 'u32[144,128]{1,0:T(1,128)}', space=vmem, size = 0x12000, scoped, tag = 'internal scratch']
  %s0 = inlined_call_operand.hbm [shape: f32[64,60], index: 0, kind: input, shape index: {}]
  %s1 = inlined_call_operand.hbm [shape: f32[60,60], index: 1, kind: input, shape index: {}]
  %s2 = inlined_call_operand.vmem [shape: f32[1,60], index: 2, kind: input, shape index: {}]
  %s3 = inlined_call_operand.hbm [shape: f32[64,60], index: 3, kind: output, shape index: {}]
  %s4 = sld [smem:[#allocation0]]
  $region53: #{tpu_custom_call.1} parent=0
    _
  %s6 = ssub.s32 1, %s4
  %s7 = scalar_select 0, %s6, %s4
  $region1: #{tpu_custom_call.1} parent=0
    #allocation2 [shape = 'u8[32768]{0}', space=vmem, size = 0x8000, scoped, tag = 'input window, operand 0']
    #allocation3 [shape = 's32[2]{0}', space=sflag, size = 0x8, scoped, tag = 'scoped memory for tpu_custom_call.1']
    #allocation4 [shape = 's32[2]{0}', space=sflag, size = 0x8, scoped, tag = 'scoped memory for tpu_custom_call.1']
    #allocation5 [shape = 'u8[32768]{0}', space=vmem, size = 0x8000, scoped, tag = 'input window, operand 1, single buffered']
    #allocation6 [shape = 's32[1]{0}', space=sflag, size = 0x4, scoped, tag = 'scoped memory for tpu_custom_call.1']
    #allocation7 [shape = 'u8[32768]{0}', space=vmem, size = 0x8000, scoped, tag = 'output window, operand 0']
    %8 = vsyncpa [#allocation3], 0
    %s9 = scalar_lea.sflag [#allocation3], 1
    %10 = vsyncpa %s9, 0
    %11 = vsyncpa [#allocation6], 0
    %12 = vsyncpa [#allocation4], 0
    %s13 = scalar_lea.sflag [#allocation4], 1
    %14 = vsyncpa %s13, 0
    loop: start=0, step=1, limit=4
    $region2: #{tpu_custom_call.1} parent=1 // loop_pre_header
      _
    $region3: #{tpu_custom_call.1} parent=1 // loop_header
      %s16 = sphi 0, %s20
      %p17 = scmp.ge.s32.totalorder %s16, 4
      %s26 = sphi 0, %s28
      %s29 = sphi 0, %s26
      %s30 = sphi 0, %s29
      %s46 = sphi 0, %s30
      %s50 = sphi 0, %s50
      %s52 = sphi 0, %s50
      %s53 = sphi 0, %s52
      %s67 = sphi 0, %s53
      %s71 = sphi 0, %s71
      %s73 = sphi 0, %s71
      %s74 = sphi 0, %s73
      %s88 = sphi 0, %s74
      %s94 = sphi 0, %s96
      %s97 = sphi 0, %s94
      %s98 = sphi 0, %s97
      %s114 = sphi 0, %s98
    $region4: #{tpu_custom_call.1} parent=1 // loop_header_branch
      %19 = sbr.rel (%p17) target = $region8
    $region5: #{tpu_custom_call.1} parent=1 // loop_body
      %s21 = ssub.s32 %s16, 1
      %s22 = ssub.s32 %s16, 2
      %s23 = sadd.s32 %s16, 1
      %s24 = ssub.s32 %s16, %s23
      %p25 = scmp.eq.s32.totalorder %s24, 0
      %s27 = sadd.s32 %s26, 1
      %s28 = scalar_select %p25, %s26, %s27
      %p31 = pneg %p25
      %p32 = scmp.eq.s32.totalorder %s16, 1
      %p33 = por %p31, %p32
      %p34 = scmp.ne.s32.totalorder %s26, %s29
      %p35 = scmp.eq.s32.totalorder %s16, 0
      %p36 = por %p34, %p35
      %p37 = scmp.ne.s32.totalorder %s26, %s29
      %p38 = scmp.eq.s32.totalorder %s21, 1
      %p39 = por %p37, %p38
      %p40 = scmp.ne.s32.totalorder %s29, %s30
      %p41 = scmp.eq.s32.totalorder %s21, 0
      %p42 = por %p40, %p41
      %p43 = scmp.ne.s32.totalorder %s29, %s30
      %p44 = scmp.eq.s32.totalorder %s22, 1
      %p45 = por %p43, %p44
      %p47 = scmp.ne.s32.totalorder %s30, %s46
      %p48 = scmp.eq.s32.totalorder %s22, 0
      %p49 = por %p47, %p48
      %s51 = sadd.s32 %s50, 1
      %p54 = scmp.eq.s32.totalorder %s16, 1
      %p55 = scmp.ne.s32.totalorder %s50, %s52
      %p56 = scmp.eq.s32.totalorder %s16, 0
      %p57 = por %p55, %p56
      %p58 = scmp.ne.s32.totalorder %s50, %s52
      %p59 = scmp.eq.s32.totalorder %s21, 1
      %p60 = por %p58, %p59
      %p61 = scmp.ne.s32.totalorder %s52, %s53
      %p62 = scmp.eq.s32.totalorder %s21, 0
      %p63 = por %p61, %p62
      %p64 = scmp.ne.s32.totalorder %s52, %s53
      %p65 = scmp.eq.s32.totalorder %s22, 1
      %p66 = por %p64, %p65
      %p68 = scmp.ne.s32.totalorder %s53, %s67
      %p69 = scmp.eq.s32.totalorder %s22, 0
      %p70 = por %p68, %p69
      %s72 = sadd.s32 %s71, 1
      %p75 = scmp.eq.s32.totalorder %s16, 1
      %p76 = scmp.ne.s32.totalorder %s71, %s73
      %p77 = scmp.eq.s32.totalorder %s16, 0
      %p78 = por %p76, %p77
      %p79 = scmp.ne.s32.totalorder %s71, %s73
      %p80 = scmp.eq.s32.totalorder %s21, 1
      %p81 = por %p79, %p80
      %p82 = scmp.ne.s32.totalorder %s73, %s74
      %p83 = scmp.eq.s32.totalorder %s21, 0
      %p84 = por %p82, %p83
      %p85 = scmp.ne.s32.totalorder %s73, %s74
      %p86 = scmp.eq.s32.totalorder %s22, 1
      %p87 = por %p85, %p86
      %p89 = scmp.ne.s32.totalorder %s74, %s88
      %p90 = scmp.eq.s32.totalorder %s22, 0
      %p91 = por %p89, %p90
      %s92 = ssub.s32 %s16, %s23
      %p93 = scmp.eq.s32.totalorder %s92, 0
      %s95 = sadd.s32 %s94, 1
      %s96 = scalar_select %p93, %s94, %s95
      %p99 = pneg %p93
      %p100 = scmp.eq.s32.totalorder %s16, 1
      %p101 = por %p99, %p100
      %p102 = scmp.ne.s32.totalorder %s94, %s97
      %p103 = scmp.eq.s32.totalorder %s16, 0
      %p104 = por %p102, %p103
      %p105 = scmp.ne.s32.totalorder %s94, %s97
      %p106 = scmp.eq.s32.totalorder %s21, 1
      %p107 = por %p105, %p106
      %p108 = scmp.ne.s32.totalorder %s97, %s98
      %p109 = scmp.eq.s32.totalorder %s21, 0
      %p110 = por %p108, %p109
      %p111 = scmp.ne.s32.totalorder %s97, %s98
      %p112 = scmp.eq.s32.totalorder %s22, 1
      %p113 = por %p111, %p112
      %p115 = scmp.ne.s32.totalorder %s98, %s114
      %p116 = scmp.eq.s32.totalorder %s22, 0
      %p117 = por %p115, %p116
      %p118 = scmp.le.s32.totalorder 1, %s16
      %p119 = scmp.lt.s32.totalorder %s16, 3
      %p120 = pnand %p118, %p119
      %p121 = pneg %p120
      // Predicated region
      $region9: #{tpu_custom_call.1} parent=5 // pred_check
        _
      $region10: #{tpu_custom_call.1} parent=5 // pred_check_branch
        %123 = sbr.rel (%p120) target = $region12
      $region11: #{tpu_custom_call.1} parent=5 // pred_region
        %s124 = ssub.s32 %s16, 1
        // Predicated region
        $region13: #{tpu_custom_call.1} parent=11 // pred_check
          %p125 = pneg %p63
        $region14: #{tpu_custom_call.1} parent=11 // pred_check_branch
          %127 = sbr.rel (%p125) target = $region16
        $region15: #{tpu_custom_call.1} parent=11 // pred_region
          %s129 = ssub.s32 1024, 1024
          %130 = vsyncadd [#allocation6], %s129
          %s131 = sshll.u32 [#allocation5], 4
          %s132 = int_to_ptr.vmem [resolvable:$true] %s131
          %137 = dma.hbm_to_vmem [thread:$0]  %s1, 1024, %s132, [#allocation6], 128, 128, 8
        $region16: #{tpu_custom_call.1} parent=11 // pred_fallthru
          _
        // Predicated region
        $region17: #{tpu_custom_call.1} parent=11 // pred_check
          %p138 = pneg %p84
        $region18: #{tpu_custom_call.1} parent=11 // pred_check_branch
          %140 = sbr.rel (%p138) target = $region20
        $region19: #{tpu_custom_call.1} parent=11 // pred_region
          _
        $region20: #{tpu_custom_call.1} parent=11 // pred_fallthru
          _
      $region12: #{tpu_custom_call.1} parent=5 // pred_fallthru
        _
      %p141 = scmp.lt.s32.totalorder %s16, 2
      // Predicated region
      $region21: #{tpu_custom_call.1} parent=5 // pred_check
        %p142 = pneg %p141
      $region22: #{tpu_custom_call.1} parent=5 // pred_check_branch
        %144 = sbr.rel (%p142) target = $region24
      $region23: #{tpu_custom_call.1} parent=5 // pred_region
        // Predicated region
        $region25: #{tpu_custom_call.1} parent=23 // pred_check
          %p145 = pneg %p36
        $region26: #{tpu_custom_call.1} parent=23 // pred_check_branch
          %147 = sbr.rel (%p145) target = $region28
        $region27: #{tpu_custom_call.1} parent=23 // pred_region
          %s148 = sand.u32 %s26, 1
          %s149 = scalar_lea.sflag [#allocation3], %s148
          %s150 = sand.u32 %s26, 1
          %s151 = smul.addr %s150, 32
          %s152 = scalar_lea.vmem [#allocation2], %s151
          %s153 = smul.u32 4, %s16
          %s155 = ssub.s32 512, 512
          %156 = vsyncadd %s149, %s155
          %s157 = smul.addr %s153, 128
          %s158 = scalar_lea.hbm %s0, %s157
          %s159 = sshll.u32 %s152, 4
          %s160 = int_to_ptr.vmem [resolvable:$true] %s159
          %165 = dma.hbm_to_vmem [thread:$0]  %s158, 512, %s160, %s149, 128, 128, 8
        $region28: #{tpu_custom_call.1} parent=23 // pred_fallthru
          _
      $region24: #{tpu_custom_call.1} parent=5 // pred_fallthru
        _
      %p166 = scmp.le.s32.totalorder 1, %s16
      %p167 = scmp.lt.s32.totalorder %s16, 3
      %p168 = pnand %p166, %p167
      %p169 = pneg %p168
      // Predicated region
      $region29: #{tpu_custom_call.1} parent=5 // pred_check
        _
      $region30: #{tpu_custom_call.1} parent=5 // pred_check_branch
        %171 = sbr.rel (%p168) target = $region32
      $region31: #{tpu_custom_call.1} parent=5 // pred_region
        %s172 = ssub.s32 %s16, 1
        %s173 = sand.u32 %s29, 1
        %s174 = scalar_lea.sflag [#allocation3], %s173
        %s175 = sand.u32 %s29, 1
        %s176 = smul.addr %s175, 32
        %s177 = scalar_lea.vmem [#allocation2], %s176
        // Predicated region
        $region33: #{tpu_custom_call.1} parent=31 // pred_check
          %p178 = pneg %p42
        $region34: #{tpu_custom_call.1} parent=31 // pred_check_branch
          %180 = sbr.rel (%p178) target = $region36
        $region35: #{tpu_custom_call.1} parent=31 // pred_region
          %181 = dma.done %s174, 512
        $region36: #{tpu_custom_call.1} parent=31 // pred_fallthru
          _
        // Predicated region
        $region37: #{tpu_custom_call.1} parent=31 // pred_check
          %p182 = pneg %p63
        $region38: #{tpu_custom_call.1} parent=31 // pred_check_branch
          %184 = sbr.rel (%p182) target = $region40
        $region39: #{tpu_custom_call.1} parent=31 // pred_region
          %185 = dma.done [#allocation6], 1024
        $region40: #{tpu_custom_call.1} parent=31 // pred_fallthru
          _
        %s186 = sand.u32 %s29, 1
        %s187 = scalar_lea.sflag [#allocation3], %s186
        %s188 = sand.u32 %s29, 1
        %s189 = smul.addr %s188, 32
        %s190 = scalar_lea.vmem [#allocation2], %s189
        %p191 = pneg %p42
        %p192 = pneg %p39
        %p193 = pneg %p63
        %p194 = pneg %p60
        %p195 = pneg %p84
        %p196 = pneg %p81
        %p197 = pneg %p110
        %p198 = pneg %p107
        %s199 = sand.u32 %s97, 1
        %s200 = scalar_lea.sflag [#allocation4], %s199
        %s201 = sand.u32 %s97, 1
        %s202 = smul.addr %s201, 32
        %s203 = scalar_lea.vmem [#allocation7], %s202
        %s204 = smul.u32 4, %s21
        %s205 = smul.u32 4, %s21
        %v206 = vld [vmem:[%s177] sm:$0xff]
        %v207 = vld [vmem:[%s177 + $0x8] sm:$0xff]
        %v208 = vld [vmem:[%s177 + $0x10] sm:$0xff]
        %v209 = vld [vmem:[%s177 + $0x18] sm:$0xff]
        %v210 = vld [vmem:[#allocation5] sm:$0xff]
        %v211 = vld [vmem:[#allocation5 + $0x8] sm:$0xff]
        %v212 = vld [vmem:[#allocation5 + $0x10] sm:$0xff]
        %v213 = vld [vmem:[#allocation5 + $0x18] sm:$0xff]
        %v214 = vld [vmem:[#allocation5 + $0x20] sm:$0xff]
        %v215 = vld [vmem:[#allocation5 + $0x28] sm:$0xff]
        %v216 = vld [vmem:[#allocation5 + $0x30] sm:$0xff]
        %v217 = vld [vmem:[#allocation5 + $0x38] sm:$0xf]
        %v218 = vld [vmem:[%s2] sm:$0x1]
        %v220 = vlaneseq
        %v221 = vshrl.u32 %v220, 7
        %v222 = vsub.s32 0, %v221
        %v223 = vrot.slane %v218, %v222
        %vm225 = vcmask 490496
        %v227 = vsel %vm225, %v206, 0
        %v230 = vsel %vm225, %v207, 0
        %v233 = vsel %vm225, %v208, 0
        %v236 = vsel %vm225, %v209, 0
        %vm238 = vcmask 1043456
        %v240 = vsel %vm238, %v217, 0
        %242 = vmatprep.subr.mxu0 0.0
        %243 = vmatpush1.msra.mxu0 %v210
        %244 = vmatprep.subr.mxu0 0.0
        %245 = vmatpush1.msra.mxu0 %v211
        %246 = vmatprep.subr.mxu0 0.0
        %247 = vmatpush1.msra.mxu0 %v212
        %248 = vmatprep.subr.mxu0 0.0
        %249 = vmatpush1.msra.mxu0 %v213
        %250 = vmatprep.subr.mxu0 0.0
        %251 = vmatpush1.msra.mxu0 %v214
        %252 = vmatprep.subr.mxu0 0.0
        %253 = vmatpush1.msra.mxu0 %v215
        %254 = vmatprep.subr.mxu0 0.0
        %255 = vmatpush1.msra.mxu0 %v216
        %256 = vmatprep.subr.mxu0 0.0
        %257 = vmatpush1.msra.mxu0 %v240
        %258 = vmatprep.subr.mxu0 0.0
        %259 = vmatpush1.msra.mxu0 0.0
        %260 = vmatprep.subr.mxu0 0.0
        %261 = vmatpush1.msra.mxu0 0.0
        %262 = vmatprep.subr.mxu0 0.0
        %263 = vmatpush1.msra.mxu0 0.0
        %264 = vmatprep.subr.mxu0 0.0
        %265 = vmatpush1.msra.mxu0 0.0
        %266 = vmatprep.subr.mxu0 0.0
        %267 = vmatpush1.msra.mxu0 0.0
        %268 = vmatprep.subr.mxu0 0.0
        %269 = vmatpush1.msra.mxu0 0.0
        %270 = vmatprep.subr.mxu0 0.0
        %271 = vmatpush1.msra.mxu0 0.0
        %272 = vmatprep.subr.mxu0 0.0
        %273 = vmatpush1.msra.mxu0 0.0
        %274 = vmatprep.subr.mxu0 0.0
        %275 = vmatpush1.msra.mxu0 0.0
        %276 = vmatprep.subr.mxu0 0.0
        %277 = vmatpush1.msra.mxu0 0.0
        %278 = vmatprep.subr.mxu0 0.0
        %279 = vmatpush1.msra.mxu0 0.0
        %280 = vmatprep.subr.mxu0 0.0
        %281 = vmatpush1.msra.mxu0 0.0
        %282 = vmatprep.subr.mxu0 0.0
        %283 = vmatpush1.msra.mxu0 0.0
        %284 = vmatprep.subr.mxu0 0.0
        %285 = vmatpush1.msra.mxu0 0.0
        %286 = vmatprep.subr.mxu0 0.0
        %287 = vmatpush1.msra.mxu0 0.0
        %288 = vmatprep.subr.mxu0 0.0
        %289 = vmatpush1.msra.mxu0 0.0
        %290 = vmatprep.subr.mxu0 0.0
        %291 = vmatpush1.msra.mxu0 0.0
        %292 = vmatprep.subr.mxu0 0.0
        %293 = vmatpush1.msra.mxu0 0.0
        %294 = vmatprep.subr.mxu0 0.0
        %295 = vmatpush1.msra.mxu0 0.0
        %296 = vmatprep.subr.mxu0 0.0
        %297 = vmatpush1.msra.mxu0 0.0
        %298 = vmatprep.subr.mxu0 0.0
        %299 = vmatpush1.msra.mxu0 0.0
        %300 = vmatprep.subr.mxu0 0.0
        %301 = vmatpush1.msra.mxu0 0.0
        %302 = vmatprep.subr.mxu0 0.0
        %303 = vmatpush1.msra.mxu0 0.0
        %304 = vmatprep.subr.mxu0 0.0
        %305 = vmatpush1.msra.mxu0 0.0
        %306 = vmatprep.mubr.f32.mxu0 0.0
        %307 = vmatmul.mubr.f32.gmra.mrb[0].mxu0 %v227
        %v308 = vpop.f32.mrb[0].mxu0
        %v309 = vadd.f32 %v223, %v308
        %v310 = vpop.f32.mrb[0].mxu0
        %311 = vmatprep.mubr.f32.mxu0 0.0
        %312 = vmatmul.mubr.f32.gmra.mrb[0].mxu0 %v230
        %v313 = vpop.f32.mrb[0].mxu0
        %v314 = vadd.f32 %v223, %v313
        %v315 = vpop.f32.mrb[0].mxu0
        %316 = vmatprep.mubr.f32.mxu0 0.0
        %317 = vmatmul.mubr.f32.gmra.mrb[0].mxu0 %v233
        %v318 = vpop.f32.mrb[0].mxu0
        %v319 = vadd.f32 %v223, %v318
        %v320 = vpop.f32.mrb[0].mxu0
        %321 = vmatprep.mubr.f32.mxu0 0.0
        %322 = vmatmul.mubr.f32.gmra.mrb[0].mxu0 %v236
        %v323 = vpop.f32.mrb[0].mxu0
        %v324 = vadd.f32 %v223, %v323
        %v325 = vpop.f32.mrb[0].mxu0
        %326 = vdwg.mxu0
        %327 = vst.msk [vmem:[%s203] sm:$0xff] %vm225, %v309
        %328 = vst.msk [vmem:[%s203 + $0x8] sm:$0xff] %vm225, %v314
        %329 = vst.msk [vmem:[%s203 + $0x10] sm:$0xff] %vm225, %v319
        %330 = vst.msk [vmem:[%s203 + $0x18] sm:$0xff] %vm225, %v324
        %s331 = sand.u32 %s97, 1
        %s332 = scalar_lea.sflag [#allocation4], %s331
        %s333 = sand.u32 %s97, 1
        %s334 = smul.addr %s333, 32
        %s335 = scalar_lea.vmem [#allocation7], %s334
        // Predicated region
        $region41: #{tpu_custom_call.1} parent=31 // pred_check
          %p336 = pneg %p107
        $region42: #{tpu_custom_call.1} parent=31 // pred_check_branch
          %338 = sbr.rel (%p336) target = $region44
        $region43: #{tpu_custom_call.1} parent=31 // pred_region
          %s339 = smul.u32 4, %s21
          %s341 = ssub.s32 512, 512
          %342 = vsyncadd %s332, %s341
          %s343 = smul.addr %s339, 128
          %s344 = scalar_lea.hbm %s3, %s343
          %s345 = sshll.u32 %s335, 4
          %s346 = int_to_ptr.vmem [resolvable:$true] %s345
          %351 = dma.vmem_to_hbm [thread:$0]  %s346, 512, %s344, %s332, 128, 128, 8
        $region44: #{tpu_custom_call.1} parent=31 // pred_fallthru
          _
      $region32: #{tpu_custom_call.1} parent=5 // pred_fallthru
        _
      %p352 = scmp.le.s32.totalorder 2, %s16
      // Predicated region
      $region45: #{tpu_custom_call.1} parent=5 // pred_check
        %p353 = pneg %p352
      $region46: #{tpu_custom_call.1} parent=5 // pred_check_branch
        %355 = sbr.rel (%p353) target = $region48
      $region47: #{tpu_custom_call.1} parent=5 // pred_region
        %s356 = ssub.s32 %s16, 2
        // Predicated region
        $region49: #{tpu_custom_call.1} parent=47 // pred_check
          %p357 = pneg %p113
        $region50: #{tpu_custom_call.1} parent=47 // pred_check_branch
          %359 = sbr.rel (%p357) target = $region52
        $region51: #{tpu_custom_call.1} parent=47 // pred_region
          %s360 = sand.u32 %s98, 1
          %s361 = scalar_lea.sflag [#allocation4], %s360
          %s362 = sand.u32 %s98, 1
          %s363 = smul.addr %s362, 32
          %s364 = scalar_lea.vmem [#allocation7], %s363
          %365 = dma.done %s361, 512
        $region52: #{tpu_custom_call.1} parent=47 // pred_fallthru
          _
      $region48: #{tpu_custom_call.1} parent=5 // pred_fallthru
        _
    $region6: #{tpu_custom_call.1} parent=1 // loop_footer
      %s20 = sadd.s32 1, %s16
    $region7: #{tpu_custom_call.1} parent=1 // loop_footer_branch
      %15 = sbr.rel target = $region3
    $region8: #{tpu_custom_call.1} parent=1 // loop_exit
      _
    %366 = vsyncpa [#allocation3], 1
    %s367 = scalar_lea.sflag [#allocation3], 1
    %368 = vsyncpa %s367, 1
    %369 = vsyncpa [#allocation6], 1
    %370 = vsyncpa [#allocation4], 1
    %s371 = scalar_lea.sflag [#allocation4], 1
    %372 = vsyncpa %s371, 1

</llo_original>
